<compile_context>
chip_gen: v7x
topology: tpu7x:2x2x1
jax: 0.10.0
libtpu: 0.0.40
codegen_flags: <defaults>
</compile_context>

<pallas_src>
import jax
import jax.numpy as jnp
from jax.experimental import pallas as pl
from jax.experimental.pallas import tpu as pltpu

# TODO(synk): ResNet50-FPN backbone, RPN proposal generation, RoIAlign and the
# detection post-processing (NMS / box decoding) have no clean single-kernel
# Pallas equivalent here; synthetic ROI features stand in for their outputs.


def _round_up(x, m):
    return -(-x // m) * m


def _clamp_vmem(nbytes):
    # Safe on all generations: v5e/v6e physical VMEM 128 MiB, v7x 64 MiB.
    return int(min(max(nbytes, 32 << 20), 48 << 20))


# ----------------------------------------------------------------------------
# Kernel 1: GeneralizedRCNNTransform normalization
#   o = x * (1/std) - mean/std   (== (x - mean)/std, divide-free)
# Tiled over the row (= N*C*H, sublane) axis; W is the full-extent lane dim so
# arbitrary real image widths (e.g. 1333) never hit a giant-block fallback.
# ----------------------------------------------------------------------------
def normalize_kernel(x_ref, scale_ref, shift_ref, o_ref):
    o_ref[...] = x_ref[...] * scale_ref[...] - shift_ref[...]


def normalize_images(images, mean, std, *, target_block_bytes=2 * 1024 * 1024):
    # images: (N, C, H, W) float32; mean/std: (C,) float32
    N, C, H, W = images.shape
    rows = N * C * H
    x2d = images.reshape(rows, W)

    # Per-row scale/shift: row index = n*C*H + c*H + h  ->  channel c.
    scale_rows = jnp.tile(jnp.repeat(1.0 / std, H), N).reshape(rows, 1)
    shift_rows = jnp.tile(jnp.repeat(mean / std, H), N).reshape(rows, 1)

    # Row tiling: each grid step moves ~target_block_bytes (>= 1-4 MB amortizes
    # the ~0.35 us per-step overhead); tile_rows kept a multiple of 8.
    tile_rows = max(8, (target_block_bytes // (W * 4)) // 8 * 8)
    tile_rows = min(tile_rows, _round_up(rows, 8))
    rows_pad = _round_up(rows, tile_rows)

    if rows_pad != rows:
        pad = rows_pad - rows
        x2d = jnp.pad(x2d, ((0, pad), (0, 0)))
        scale_rows = jnp.pad(scale_rows, ((0, pad), (0, 0)))
        shift_rows = jnp.pad(shift_rows, ((0, pad), (0, 0)))

    grid = (rows_pad // tile_rows,)
    block_bytes = tile_rows * W * 4
    vmem_limit = _clamp_vmem(4 * block_bytes + (4 << 20))  # 2x in + 2x out + margin

    out = pl.pallas_call(
        normalize_kernel,
        out_shape=jax.ShapeDtypeStruct((rows_pad, W), jnp.float32),
        grid=grid,
        in_specs=[
            pl.BlockSpec((tile_rows, W), lambda i: (i, 0)),
            pl.BlockSpec((tile_rows, 1), lambda i: (i, 0)),
            pl.BlockSpec((tile_rows, 1), lambda i: (i, 0)),
        ],
        out_specs=pl.BlockSpec((tile_rows, W), lambda i: (i, 0)),
        compiler_params=pltpu.CompilerParams(
            dimension_semantics=("parallel",),
            vmem_limit_bytes=vmem_limit,
        ),
    )(x2d, scale_rows, shift_rows)
    return out[:rows].reshape(N, C, H, W)


# ----------------------------------------------------------------------------
# Kernel 2: FastRCNNPredictor (cls_score Linear + bbox_pred Linear), fused into
# a single bf16 matmul (f32 accumulate) with a concatenated, lane-padded weight.
# ----------------------------------------------------------------------------
def box_fused_kernel(x_ref, w_ref, b_ref, o_ref):
    o_ref[...] = (
        jnp.dot(x_ref[...], w_ref[...], preferred_element_type=jnp.float32)
        + b_ref[...]
    )


def box_predictor(box_feats, w_cls, b_cls, w_bbox, b_bbox, *, tile_r=256):
    R, F = box_feats.shape
    C = w_cls.shape[1]
    out_dim = 5 * C                      # [cls | bbox] concatenated
    out_pad = _round_up(out_dim, 128)    # lane-dense output slab

    w = jnp.concatenate([w_cls, w_bbox], axis=1)                 # (F, 5C)
    w = jnp.pad(w, ((0, 0), (0, out_pad - out_dim)))
    w = w.astype(jnp.bfloat16)                                   # (F, out_pad) bf16
    b = jnp.concatenate([b_cls, b_bbox]).reshape(1, out_dim)
    b = jnp.pad(b, ((0, 0), (0, out_pad - out_dim)))             # (1, out_pad) f32

    R_pad = _round_up(R, tile_r)
    x = jnp.pad(box_feats, ((0, R_pad - R), (0, 0))).astype(jnp.bfloat16)

    blk_in = tile_r * F * 2
    blk_out = tile_r * out_pad * 4
    w_bytes = F * out_pad * 2 + out_pad * 4
    vmem_limit = _clamp_vmem(2 * (blk_in + blk_out) + w_bytes + (4 << 20))

    out = pl.pallas_call(
        box_fused_kernel,
        out_shape=jax.ShapeDtypeStruct((R_pad, out_pad), jnp.float32),
        grid=(R_pad // tile_r,),
        in_specs=[
            pl.BlockSpec((tile_r, F), lambda i: (i, 0)),
            pl.BlockSpec((F, out_pad), lambda i: (0, 0)),   # weights resident
            pl.BlockSpec((1, out_pad), lambda i: (0, 0)),
        ],
        out_specs=pl.BlockSpec((tile_r, out_pad), lambda i: (i, 0)),
        compiler_params=pltpu.CompilerParams(
            dimension_semantics=("parallel",),
            vmem_limit_bytes=vmem_limit,
        ),
    )(x, w, b)

    scores = out[:R, :C]
    deltas = out[:R, C:5 * C]
    return scores, deltas


# ----------------------------------------------------------------------------
# Kernel 3: MaskRCNNPredictor
#   ConvTranspose2d(Cin, hidden, k=2, s=2) -> ReLU -> Conv2d(hidden, C, k=1)
# Expressed as:
#   y = relu(x_flat @ W1 + b1)                     # (P, 4*hidden), k = dy*2+dx
#   o[:, k*Cp:(k+1)*Cp] = y[:, k*h:(k+1)*h] @ W2 + b2   (4 sub-matmuls, each
#   stored directly to a 128-aligned lane slice; Cp = round_up(C, 128))
# All matmul operands in bf16, accumulation in f32.
# ----------------------------------------------------------------------------
def mask_predictor(mask_feats_nchw, w_ct, b_ct, w_1x1, b_1x1, *, tile_p=1024):
    # mask_feats_nchw: (R, Cin, Hm, Wm)
    # w_ct (ConvTranspose2d weight, torch): (Cin, hidden, 2, 2)
    # w_1x1 (Conv2d 1x1 weight, torch):     (C, hidden, 1, 1)
    R, Cin, Hm, Wm = mask_feats_nchw.shape
    hidden = w_ct.shape[1]
    C = w_1x1.shape[0]
    Cp = _round_up(C, 128)               # lane-aligned per-sub-matmul output

    # NCHW -> NHWC -> (P, Cin), in bf16.
    # TODO(synk): fold this transpose into the kernel (transposed-LHS dot on a
    # per-ROI (Cin, Hm*Wm) tile) to save an extra HBM pass at production sizes;
    # kept wrapper-side here for lowering robustness.
    x_flat = jnp.transpose(mask_feats_nchw, (0, 2, 3, 1)).reshape(R * Hm * Wm, Cin)
    x_flat = x_flat.astype(jnp.bfloat16)
    P = R * Hm * Wm
    tile_p = min(tile_p, _round_up(P, 8))
    P_pad = _round_up(P, tile_p)
    x_flat = jnp.pad(x_flat, ((0, P_pad - P), (0, 0)))

    # Deconv weight -> matmul weight: (Cin, 2, 2, hidden) -> (Cin, 4*hidden),
    # sub-block k = dy*2 + dx  (PyTorch ConvTranspose2d scatter convention).
    w1 = jnp.transpose(w_ct, (0, 2, 3, 1)).reshape(Cin, 4 * hidden).astype(jnp.bfloat16)
    b1 = jnp.tile(b_ct, 4).reshape(1, 4 * hidden)                      # f32

    # 1x1 conv weight -> (hidden, Cp), single resident block (no kron zeros).
    w2 = jnp.transpose(w_1x1.reshape(C, hidden), (1, 0))
    w2 = jnp.pad(w2, ((0, 0), (0, Cp - C))).astype(jnp.bfloat16)
    b2 = jnp.pad(b_1x1, (0, Cp - C)).reshape(1, Cp)                    # f32

    def mask_predictor_kernel(x_ref, w1_ref, b1_ref, w2_ref, b2_ref, o_ref):
        y = (
            jnp.dot(x_ref[...], w1_ref[...], preferred_element_type=jnp.float32)
            + b1_ref[...]
        )
        # bf16 intermediate: halves VMEM/vreg traffic between the two stages
        # and matches the MXU's native input dtype.
        y = jnp.maximum(y, 0.0).astype(jnp.bfloat16)
        w2v = w2_ref[...]
        b2v = b2_ref[...]
        # Four sub-matmuls against one (hidden, Cp) weight; each result goes
        # straight to its 128-aligned lane slice (no concatenate relayout).
        for k in range(4):
            part = (
                jnp.dot(y[:, k * hidden:(k + 1) * hidden], w2v,
                        preferred_element_type=jnp.float32)
                + b2v
            )
            o_ref[:, k * Cp:(k + 1) * Cp] = part

    blk_in = tile_p * Cin * 2
    blk_out = tile_p * 4 * Cp * 4
    y_bytes = tile_p * 4 * hidden * (4 + 2)
    w_bytes = Cin * 4 * hidden * 2 + 4 * hidden * 4 + hidden * Cp * 2 + Cp * 4
    vmem_limit = _clamp_vmem(2 * (blk_in + blk_out) + y_bytes + w_bytes + (4 << 20))

    out_flat = pl.pallas_call(
        mask_predictor_kernel,
        out_shape=jax.ShapeDtypeStruct((P_pad, 4 * Cp), jnp.float32),
        grid=(P_pad // tile_p,),
        in_specs=[
            pl.BlockSpec((tile_p, Cin), lambda i: (i, 0)),
            pl.BlockSpec((Cin, 4 * hidden), lambda i: (0, 0)),
            pl.BlockSpec((1, 4 * hidden), lambda i: (0, 0)),
            pl.BlockSpec((hidden, Cp), lambda i: (0, 0)),
            pl.BlockSpec((1, Cp), lambda i: (0, 0)),
        ],
        out_specs=pl.BlockSpec((tile_p, 4 * Cp), lambda i: (i, 0)),
        compiler_params=pltpu.CompilerParams(
            dimension_semantics=("parallel",),
            vmem_limit_bytes=vmem_limit,
        ),
    )(x_flat, w1, b1, w2, b2)

    # (P, 4*Cp) -> (R, Hm, Wm, dy, dx, Cp) -> drop pad -> NCHW (R, C, 2Hm, 2Wm)
    out = out_flat[:P, :].reshape(R, Hm, Wm, 2, 2, Cp)[..., :C]
    out = jnp.transpose(out, (0, 5, 1, 3, 2, 4)).reshape(R, C, 2 * Hm, 2 * Wm)
    return out


# ----------------------------------------------------------------------------
# Synthetic MaskRCNN "model" wiring the Pallas kernels together.
# ----------------------------------------------------------------------------
def mask_rcnn_forward(images, params):
    images_norm = normalize_images(images, params["img_mean"], params["img_std"])

    # TODO(synk): backbone+RPN+RoIAlign would produce these ROI features.
    box_feats = params["roi_box_feats"]
    mask_feats = params["roi_mask_feats"]

    cls_logits, box_deltas = box_predictor(
        box_feats, params["w_cls"], params["b_cls"], params["w_bbox"], params["b_bbox"]
    )
    mask_logits = mask_predictor(
        mask_feats, params["w_ct"], params["b_ct"], params["w_1x1"], params["b_1x1"]
    )
    return {
        "images_normalized": images_norm,
        "class_logits": cls_logits,
        "box_regression": box_deltas,
        "mask_logits": mask_logits,
    }


if __name__ == "__main__":
    key = jax.random.PRNGKey(0)
    keys = jax.random.split(key, 12)

    # Small synthetic shapes (real model: F=1024, Cin=256, hidden=256, 14x14).
    N, IMG_C, IMG_H, IMG_W = 2, 3, 16, 16      # images NCHW
    NUM_CLASSES = 8
    R = 8                                       # number of ROIs
    F = 64                                      # box-head feature dim
    CIN = 32                                    # mask-head in_channels
    HIDDEN = 32                                 # number_hidden_layer (small)
    HM = WM = 8                                 # mask ROI spatial size

    images = jax.random.uniform(keys[0], (N, IMG_C, IMG_H, IMG_W), jnp.float32)

    params = {
        "img_mean": jnp.array([0.485, 0.456, 0.406], jnp.float32),
        "img_std": jnp.array([0.229, 0.224, 0.225], jnp.float32),
        # stand-in ROI features (see TODO above)
        "roi_box_feats": jax.random.normal(keys[1], (R, F), jnp.float32),
        "roi_mask_feats": jax.random.normal(keys[2], (R, CIN, HM, WM), jnp.float32),
        # FastRCNNPredictor params
        "w_cls": 0.01 * jax.random.normal(keys[3], (F, NUM_CLASSES), jnp.float32),
        "b_cls": jnp.zeros((NUM_CLASSES,), jnp.float32),
        "w_bbox": 0.01 * jax.random.normal(keys[4], (F, 4 * NUM_CLASSES), jnp.float32),
        "b_bbox": jnp.zeros((4 * NUM_CLASSES,), jnp.float32),
        # MaskRCNNPredictor params (torch weight conventions)
        "w_ct": 0.1 * jax.random.normal(keys[5], (CIN, HIDDEN, 2, 2), jnp.float32),
        "b_ct": jnp.zeros((HIDDEN,), jnp.float32),
        "w_1x1": 0.1 * jax.random.normal(keys[6], (NUM_CLASSES, HIDDEN, 1, 1), jnp.float32),
        "b_1x1": jnp.zeros((NUM_CLASSES,), jnp.float32),
    }

    out = jax.block_until_ready(mask_rcnn_forward(images, params))

    # ---- Lightweight numerical reference checks (plain JAX) -----------------
    # Matmul-head kernels run in bf16 (f32 accumulate), so the references cast
    # their inputs through bf16 the same way; normalize is exact f32.
    def bf(a):
        return a.astype(jnp.bfloat16).astype(jnp.float32)

    ref_norm = (images - params["img_mean"].reshape(1, 3, 1, 1)) / params["img_std"].reshape(1, 3, 1, 1)
    assert jnp.allclose(out["images_normalized"], ref_norm, rtol=1e-5, atol=1e-5)

    x_b = bf(params["roi_box_feats"])
    ref_cls = x_b @ bf(params["w_cls"]) + params["b_cls"]
    ref_box = x_b @ bf(params["w_bbox"]) + params["b_bbox"]
    assert jnp.allclose(out["class_logits"], ref_cls, rtol=1e-2, atol=1e-3)
    assert jnp.allclose(out["box_regression"], ref_box, rtol=1e-2, atol=1e-3)

    # Reference for ConvTranspose2d(k=2, s=2) with PyTorch scatter semantics:
    #   y[r, 2i+dy, 2j+dx, h] = sum_c x[r, c, i, j] * w_ct[c, h, dy, dx]
    xm = bf(params["roi_mask_feats"])
    wct = bf(params["w_ct"])
    y = jnp.einsum("rcij,chyx->riyjxh", xm, wct)
    y = y.reshape(R, 2 * HM, 2 * WM, HIDDEN)
    y = jnp.maximum(y + params["b_ct"], 0.0)
    y = bf(y)  # kernel casts the ReLU output to bf16 before the 1x1 stage
    w2_ref = bf(jnp.transpose(params["w_1x1"].reshape(NUM_CLASSES, HIDDEN), (1, 0)))
    ref_mask = jnp.einsum("rhwc,cd->rhwd", y, w2_ref) + params["b_1x1"]
    ref_mask = jnp.transpose(ref_mask, (0, 3, 1, 2))
    assert jnp.allclose(out["mask_logits"], ref_mask, rtol=1e-2, atol=1e-2)

    print("KERNEL_OK")
</pallas_src>

<mosaic_0001>
module attributes {stable_mosaic.version = 11 : i64} {
  func.func @normalize_kernel(%arg0: i32, %arg1: memref<96x16xf32, #tpu.memory_space<vmem>>, %arg2: memref<96x1xf32, #tpu.memory_space<vmem>>, %arg3: memref<96x1xf32, #tpu.memory_space<vmem>>, %arg4: memref<96x16xf32, #tpu.memory_space<vmem>>) attributes {dimension_semantics = [#tpu.dimension_semantics<parallel>], iteration_bounds = array<i64: 1>, scalar_prefetch = 0 : i64, scratch_operands = 0 : i64, tpu.core_type = #tpu.core_type<tc>, window_params = [{transform_indices = @transform_0, window_bounds = array<i64: 96, 16>}, {transform_indices = @transform_1, window_bounds = array<i64: 96, 1>}, {transform_indices = @transform_2, window_bounds = array<i64: 96, 1>}, {transform_indices = @transform_3, window_bounds = array<i64: 96, 16>}]} {
    %c0 = arith.constant 0 : index
    %c0_0 = arith.constant 0 : index
    %0 = vector.load %arg1[%c0, %c0_0] : memref<96x16xf32, #tpu.memory_space<vmem>>, vector<96x16xf32>
    %c0_1 = arith.constant 0 : index
    %c0_2 = arith.constant 0 : index
    %1 = vector.load %arg2[%c0_1, %c0_2] : memref<96x1xf32, #tpu.memory_space<vmem>>, vector<96x1xf32>
    %2 = vector.broadcast %1 : vector<96x1xf32> to vector<96x16xf32>
    %3 = arith.mulf %0, %2 : vector<96x16xf32>
    %c0_3 = arith.constant 0 : index
    %c0_4 = arith.constant 0 : index
    %4 = vector.load %arg3[%c0_3, %c0_4] : memref<96x1xf32, #tpu.memory_space<vmem>>, vector<96x1xf32>
    %5 = vector.broadcast %4 : vector<96x1xf32> to vector<96x16xf32>
    %6 = arith.subf %3, %5 : vector<96x16xf32>
    %c0_5 = arith.constant 0 : index
    %c0_6 = arith.constant 0 : index
    %7 = vector.load %arg4[%c0_5, %c0_6] : memref<96x16xf32, #tpu.memory_space<vmem>>, vector<96x16xf32>
    tpu.vector_store %arg4[%c0_5, %c0_6], %6 {strides = array<i32>} : memref<96x16xf32, #tpu.memory_space<vmem>>, vector<96x16xf32>,
    return
  }
  func.func @transform_0(%arg0: i32) -> (i32, i32) {
    %c0_i32 = arith.constant 0 : i32
    %c0_i32_0 = arith.constant 0 : i32
    return %arg0, %c0_i32 : i32, i32
  }
  func.func @transform_1(%arg0: i32) -> (i32, i32) {
    %c0_i32 = arith.constant 0 : i32
    %c0_i32_0 = arith.constant 0 : i32
    return %arg0, %c0_i32 : i32, i32
  }
  func.func @transform_2(%arg0: i32) -> (i32, i32) {
    %c0_i32 = arith.constant 0 : i32
    %c0_i32_0 = arith.constant 0 : i32
    return %arg0, %c0_i32 : i32, i32
  }
  func.func @transform_3(%arg0: i32) -> (i32, i32) {
    %c0_i32 = arith.constant 0 : i32
    %c0_i32_0 = arith.constant 0 : i32
    return %arg0, %c0_i32 : i32, i32
  }
}

</mosaic_0001>

<llo_original>
// kernel: tpu_custom_call.1
$region0: #{tpu_custom_call.1}
  #allocation0 [shape = 'u32[]', space=smem, size = 0x4, offset = 0x4, fixed_abs, tag = 'smem constant byte address 0x4 - core index']
  #allocation1 [shape = 'u32[144,128]{1,0:T(1,128)}', space=vmem, size = 0x12000, scoped, tag = 'internal scratch']
  %s0 = inlined_call_operand.vmem [shape: f32[96,16], index: 0, kind: input, shape index: {}]
  %s1 = inlined_call_operand.vmem [shape: f32[96,1], index: 1, kind: input, shape index: {}]
  %s2 = inlined_call_operand.vmem [shape: f32[96,1], index: 2, kind: input, shape index: {}]
  %s3 = inlined_call_operand.vmem [shape: f32[96,16], index: 3, kind: output, shape index: {}]
  %s4 = sld [smem:[#allocation0]]
  $region22: #{tpu_custom_call.1} parent=0
    _
  %s6 = ssub.s32 1, %s4
  %s7 = scalar_select 0, %s6, %s4
  // Predicated region
  $region2: #{tpu_custom_call.1} parent=0 // pred_check
    _
  $region3: #{tpu_custom_call.1} parent=0 // pred_check_branch
    %9 = sbr.rel (0) target = $region5
  $region4: #{tpu_custom_call.1} parent=0 // pred_region
    _
  $region5: #{tpu_custom_call.1} parent=0 // pred_fallthru
    _
  // Predicated region
  $region6: #{tpu_custom_call.1} parent=0 // pred_check
    _
  $region7: #{tpu_custom_call.1} parent=0 // pred_check_branch
    %11 = sbr.rel (0) target = $region9
  $region8: #{tpu_custom_call.1} parent=0 // pred_region
    _
  $region9: #{tpu_custom_call.1} parent=0 // pred_fallthru
    _
  // Predicated region
  $region10: #{tpu_custom_call.1} parent=0 // pred_check
    _
  $region11: #{tpu_custom_call.1} parent=0 // pred_check_branch
    %13 = sbr.rel (0) target = $region13
  $region12: #{tpu_custom_call.1} parent=0 // pred_region
    _
  $region13: #{tpu_custom_call.1} parent=0 // pred_fallthru
    _
  %v14 = vld [vmem:[%s0] sm:$0xff]
  %v15 = vld [vmem:[%s0 + $0x8] sm:$0xff]
  %v16 = vld [vmem:[%s0 + $0x10] sm:$0xff]
  %v17 = vld [vmem:[%s0 + $0x18] sm:$0xff]
  %v18 = vld [vmem:[%s0 + $0x20] sm:$0xff]
  %v19 = vld [vmem:[%s0 + $0x28] sm:$0xff]
  %v20 = vld [vmem:[%s0 + $0x30] sm:$0xff]
  %v21 = vld [vmem:[%s0 + $0x38] sm:$0xff]
  %v22 = vld [vmem:[%s0 + $0x40] sm:$0xff]
  %v23 = vld [vmem:[%s0 + $0x48] sm:$0xff]
  %v24 = vld [vmem:[%s0 + $0x50] sm:$0xff]
  %v25 = vld [vmem:[%s0 + $0x58] sm:$0xff]
  %v26 = vld [vmem:[%s1] sm:$0xff]
  %v27 = vld [vmem:[%s1 + $0x8] sm:$0xff]
  %v28 = vld [vmem:[%s1 + $0x10] sm:$0xff]
  %v29 = vld [vmem:[%s1 + $0x18] sm:$0xff]
  %v30 = vld [vmem:[%s1 + $0x20] sm:$0xff]
  %v31 = vld [vmem:[%s1 + $0x28] sm:$0xff]
  %v32 = vld [vmem:[%s1 + $0x30] sm:$0xff]
  %v33 = vld [vmem:[%s1 + $0x38] sm:$0xff]
  %v34 = vld [vmem:[%s1 + $0x40] sm:$0xff]
  %v35 = vld [vmem:[%s1 + $0x48] sm:$0xff]
  %v36 = vld [vmem:[%s1 + $0x50] sm:$0xff]
  %v37 = vld [vmem:[%s1 + $0x58] sm:$0xff]
  %39 = vset.pattern.permute.xlu0 0
  %40 = vperm.xlu0 %39, %v26
  %v41 = vpop.permute.xlu0 %40
  %44 = vset.pattern.permute.xlu0 0
  %45 = vperm.xlu0 %44, %v27
  %v46 = vpop.permute.xlu0 %45
  %49 = vset.pattern.permute.xlu0 0
  %50 = vperm.xlu0 %49, %v28
  %v51 = vpop.permute.xlu0 %50
  %54 = vset.pattern.permute.xlu0 0
  %55 = vperm.xlu0 %54, %v29
  %v56 = vpop.permute.xlu0 %55
  %59 = vset.pattern.permute.xlu0 0
  %60 = vperm.xlu0 %59, %v30
  %v61 = vpop.permute.xlu0 %60
  %64 = vset.pattern.permute.xlu0 0
  %65 = vperm.xlu0 %64, %v31
  %v66 = vpop.permute.xlu0 %65
  %69 = vset.pattern.permute.xlu0 0
  %70 = vperm.xlu0 %69, %v32
  %v71 = vpop.permute.xlu0 %70
  %74 = vset.pattern.permute.xlu0 0
  %75 = vperm.xlu0 %74, %v33
  %v76 = vpop.permute.xlu0 %75
  %79 = vset.pattern.permute.xlu0 0
  %80 = vperm.xlu0 %79, %v34
  %v81 = vpop.permute.xlu0 %80
  %84 = vset.pattern.permute.xlu0 0
  %85 = vperm.xlu0 %84, %v35
  %v86 = vpop.permute.xlu0 %85
  %89 = vset.pattern.permute.xlu0 0
  %90 = vperm.xlu0 %89, %v36
  %v91 = vpop.permute.xlu0 %90
  %94 = vset.pattern.permute.xlu0 0
  %95 = vperm.xlu0 %94, %v37
  %v96 = vpop.permute.xlu0 %95
  %v98 = vmul.f32 %v14, %v41
  %v99 = vmul.f32 %v15, %v46
  %v100 = vmul.f32 %v16, %v51
  %v101 = vmul.f32 %v17, %v56
  %v102 = vmul.f32 %v18, %v61
  %v103 = vmul.f32 %v19, %v66
  %v104 = vmul.f32 %v20, %v71
  %v105 = vmul.f32 %v21, %v76
  %v106 = vmul.f32 %v22, %v81
  %v107 = vmul.f32 %v23, %v86
  %v108 = vmul.f32 %v24, %v91
  %v109 = vmul.f32 %v25, %v96
  %v110 = vld [vmem:[%s2] sm:$0xff]
  %v111 = vld [vmem:[%s2 + $0x8] sm:$0xff]
  %v112 = vld [vmem:[%s2 + $0x10] sm:$0xff]
  %v113 = vld [vmem:[%s2 + $0x18] sm:$0xff]
  %v114 = vld [vmem:[%s2 + $0x20] sm:$0xff]
  %v115 = vld [vmem:[%s2 + $0x28] sm:$0xff]
  %v116 = vld [vmem:[%s2 + $0x30] sm:$0xff]
  %v117 = vld [vmem:[%s2 + $0x38] sm:$0xff]
  %v118 = vld [vmem:[%s2 + $0x40] sm:$0xff]
  %v119 = vld [vmem:[%s2 + $0x48] sm:$0xff]
  %v120 = vld [vmem:[%s2 + $0x50] sm:$0xff]
  %v121 = vld [vmem:[%s2 + $0x58] sm:$0xff]
  %123 = vset.pattern.permute.xlu0 0
  %124 = vperm.xlu0 %123, %v110
  %v125 = vpop.permute.xlu0 %124
  %128 = vset.pattern.permute.xlu0 0
  %129 = vperm.xlu0 %128, %v111
  %v130 = vpop.permute.xlu0 %129
  %133 = vset.pattern.permute.xlu0 0
  %134 = vperm.xlu0 %133, %v112
  %v135 = vpop.permute.xlu0 %134
  %138 = vset.pattern.permute.xlu0 0
  %139 = vperm.xlu0 %138, %v113
  %v140 = vpop.permute.xlu0 %139
  %143 = vset.pattern.permute.xlu0 0
  %144 = vperm.xlu0 %143, %v114
  %v145 = vpop.permute.xlu0 %144
  %148 = vset.pattern.permute.xlu0 0
  %149 = vperm.xlu0 %148, %v115
  %v150 = vpop.permute.xlu0 %149
  %153 = vset.pattern.permute.xlu0 0
  %154 = vperm.xlu0 %153, %v116
  %v155 = vpop.permute.xlu0 %154
  %158 = vset.pattern.permute.xlu0 0
  %159 = vperm.xlu0 %158, %v117
  %v160 = vpop.permute.xlu0 %159
  %163 = vset.pattern.permute.xlu0 0
  %164 = vperm.xlu0 %163, %v118
  %v165 = vpop.permute.xlu0 %164
  %168 = vset.pattern.permute.xlu0 0
  %169 = vperm.xlu0 %168, %v119
  %v170 = vpop.permute.xlu0 %169
  %173 = vset.pattern.permute.xlu0 0
  %174 = vperm.xlu0 %173, %v120
  %v175 = vpop.permute.xlu0 %174
  %178 = vset.pattern.permute.xlu0 0
  %179 = vperm.xlu0 %178, %v121
  %v180 = vpop.permute.xlu0 %179
  %v182 = vsub.f32 %v98, %v125
  %v183 = vsub.f32 %v99, %v130
  %v184 = vsub.f32 %v100, %v135
  %v185 = vsub.f32 %v101, %v140
  %v186 = vsub.f32 %v102, %v145
  %v187 = vsub.f32 %v103, %v150
  %v188 = vsub.f32 %v104, %v155
  %v189 = vsub.f32 %v105, %v160
  %v190 = vsub.f32 %v106, %v165
  %v191 = vsub.f32 %v107, %v170
  %v192 = vsub.f32 %v108, %v175
  %v193 = vsub.f32 %v109, %v180
  %vm194 = vcmask 130048
  %195 = vst.msk [vmem:[%s3] sm:$0xff] %vm194, %v182
  %196 = vst.msk [vmem:[%s3 + $0x8] sm:$0xff] %vm194, %v183
  %197 = vst.msk [vmem:[%s3 + $0x10] sm:$0xff] %vm194, %v184
  %198 = vst.msk [vmem:[%s3 + $0x18] sm:$0xff] %vm194, %v185
  %199 = vst.msk [vmem:[%s3 + $0x20] sm:$0xff] %vm194, %v186
  %200 = vst.msk [vmem:[%s3 + $0x28] sm:$0xff] %vm194, %v187
  %201 = vst.msk [vmem:[%s3 + $0x30] sm:$0xff] %vm194, %v188
  %202 = vst.msk [vmem:[%s3 + $0x38] sm:$0xff] %vm194, %v189
  %203 = vst.msk [vmem:[%s3 + $0x40] sm:$0xff] %vm194, %v190
  %204 = vst.msk [vmem:[%s3 + $0x48] sm:$0xff] %vm194, %v191
  %205 = vst.msk [vmem:[%s3 + $0x50] sm:$0xff] %vm194, %v192
  %206 = vst.msk [vmem:[%s3 + $0x58] sm:$0xff] %vm194, %v193
  // Predicated region
  $region14: #{tpu_custom_call.1} parent=0 // pred_check
    _
  $region15: #{tpu_custom_call.1} parent=0 // pred_check_branch
    %208 = sbr.rel (0) target = $region17
  $region16: #{tpu_custom_call.1} parent=0 // pred_region
    _
  $region17: #{tpu_custom_call.1} parent=0 // pred_fallthru
    _
  // Predicated region
  $region18: #{tpu_custom_call.1} parent=0 // pred_check
    _
  $region19: #{tpu_custom_call.1} parent=0 // pred_check_branch
    %210 = sbr.rel (0) target = $region21
  $region20: #{tpu_custom_call.1} parent=0 // pred_region
    _
  $region21: #{tpu_custom_call.1} parent=0 // pred_fallthru
    _

</llo_original>
